<compile_context>
chip_gen: v5e
topology: v5e:2x2
jax: 0.10.0
libtpu: 0.0.40
codegen_flags: <defaults>
</compile_context>

<pallas_src>
import functools
import math

import numpy as np
import jax
import jax.numpy as jnp
from jax.experimental import pallas as pl
from jax.experimental.pallas import tpu as pltpu

COMPUTE_DTYPE = jnp.bfloat16   # MXU operand dtype (accumulation stays f32)


def _round_up(x, m):
    return ((x + m - 1) // m) * m


# ------------------------------ tiled linear (matmul + bias) ------------------------------

def _matmul_bias_kernel(x_ref, w_ref, b_ref, o_ref, acc_ref):
    k = pl.program_id(2)

    @pl.when(k == 0)
    def _init():
        acc_ref[...] = jnp.zeros_like(acc_ref)

    acc_ref[...] += jnp.dot(x_ref[...], w_ref[...],
                            preferred_element_type=jnp.float32)

    @pl.when(k == pl.num_programs(2) - 1)
    def _finalize():
        o_ref[...] = (acc_ref[...] + b_ref[...]).astype(o_ref.dtype)   # bias added once


def pack_linear(w, b=None):
    """Pre-fuse/pre-cast/pre-pad a (K, N) weight + (N,) bias once, at init time."""
    K, N = w.shape
    Kp, Np = _round_up(K, 128), _round_up(N, 128)
    tk = 256 if Kp % 256 == 0 else 128
    tn = 512 if Np % 512 == 0 else (256 if Np % 256 == 0 else 128)
    wp = jnp.pad(w.astype(COMPUTE_DTYPE), ((0, Kp - K), (0, Np - N)))
    if b is None:
        b = jnp.zeros((N,), jnp.float32)
    bp = jnp.pad(b.astype(jnp.float32).reshape(1, N), ((0, 0), (0, Np - N)))
    return dict(w=wp, b=bp, K=K, N=N, tk=tk, tn=tn)


def pallas_linear(x, packed, out_dtype):
    """x: (M, K) -> (M, N) with pre-packed bf16 weights; f32 accumulation."""
    M, K = x.shape
    assert K == packed["K"]
    wp, bp = packed["w"], packed["b"]
    Kp, Np = wp.shape
    tk, tn = packed["tk"], packed["tn"]

    tm = min(512, _round_up(M, 8))
    Mp = _round_up(M, tm)

    xp = x.astype(COMPUTE_DTYPE)
    if Mp != M or Kp != K:
        xp = jnp.pad(xp, ((0, Mp - M), (0, Kp - K)))

    out = pl.pallas_call(
        _matmul_bias_kernel,
        out_shape=jax.ShapeDtypeStruct((Mp, Np), out_dtype),
        grid_spec=pltpu.PrefetchScalarGridSpec(
            num_scalar_prefetch=0,
            grid=(Mp // tm, Np // tn, Kp // tk),
            in_specs=[
                pl.BlockSpec((tm, tk), lambda i, j, kk: (i, kk)),
                pl.BlockSpec((tk, tn), lambda i, j, kk: (kk, j)),
                pl.BlockSpec((1, tn), lambda i, j, kk: (0, j)),
            ],
            out_specs=pl.BlockSpec((tm, tn), lambda i, j, kk: (i, j)),
            scratch_shapes=[pltpu.VMEM((tm, tn), jnp.float32)],
        ),
        compiler_params=pltpu.CompilerParams(
            dimension_semantics=("parallel", "parallel", "arbitrary")),
    )(xp, wp, bp)
    return out[:M, :packed["N"]]


# ------------------------------ flash attention (per-head on the grid) ------------------------------

def _flash_attn_kernel(q_ref, k_ref, v_ref, o_ref, m_sc, l_sc, acc_sc, *,
                       causal, kv_len, q_tile, kv_tile, mask_pad):
    qi = pl.program_id(1)
    ki = pl.program_id(2)

    @pl.when(ki == 0)
    def _init():
        m_sc[...] = jnp.full(m_sc.shape, -jnp.inf, m_sc.dtype)
        l_sc[...] = jnp.zeros_like(l_sc)
        acc_sc[...] = jnp.zeros_like(acc_sc)

    def _compute():
        q = q_ref[0]    # (tq, Dh) bf16 — softmax scale already folded into the q projection
        k = k_ref[0]    # (tkv, Dh) bf16
        v = v_ref[0]    # (tkv, Dh) bf16

        s = jax.lax.dot_general(q, k, (((1,), (1,)), ((), ())),
                                preferred_element_type=jnp.float32)     # (tq, tkv) f32

        if causal or mask_pad:
            col = ki * kv_tile + jax.lax.broadcasted_iota(jnp.int32, s.shape, 1)
            valid = col < kv_len
            if causal:
                row = qi * q_tile + jax.lax.broadcasted_iota(jnp.int32, s.shape, 0)
                valid = jnp.logical_and(valid, col <= row)
            s = jnp.where(valid, s, jnp.float32(-1e30))   # finite: avoids exp(-inf - -inf)

        # online softmax; m/l stored lane-broadcast as (tq, 128) for full-vreg updates
        m_prev = m_sc[...]
        l_prev = l_sc[...]
        m_next = jnp.maximum(m_prev, jnp.max(s, axis=-1, keepdims=True))
        alpha = jnp.exp(m_prev - m_next)
        p = jnp.exp(s - m_next[:, :1])                                   # (tq, tkv) f32
        l_sc[...] = alpha * l_prev + jnp.sum(p, axis=-1, keepdims=True)
        acc_sc[...] = acc_sc[...] * alpha[:, :1] + jnp.dot(
            p.astype(v.dtype), v, preferred_element_type=jnp.float32)    # bf16 PV matmul
        m_sc[...] = m_next

    if causal:
        # compute skipped for fully-masked kv tiles (their DMA is elided by the index_map)
        pl.when(ki * kv_tile <= qi * q_tile + (q_tile - 1))(_compute)
    else:
        _compute()

    @pl.when(ki == pl.num_programs(2) - 1)
    def _finalize():
        l = l_sc[:, :1]
        r = pl.reciprocal(l, approx=True)     # EUP slot
        r = r * (2.0 - l * r)                 # one Newton step
        o_ref[0] = (acc_sc[...] * r).astype(o_ref.dtype)   # single lane-dense store


def pallas_flash_attention(q, k, v, causal, *, tq=256, tkv=256):
    """q/k/v: (B*H, T, Dh); heads are a leading parallel grid axis. Returns (B*H, Tq, Dh)."""
    BH, Tq, Dh = q.shape
    Tk = k.shape[1]

    tq = min(tq, _round_up(Tq, 8))
    tkv = min(tkv, _round_up(Tk, 8))
    Tqp, Tkp = _round_up(Tq, tq), _round_up(Tk, tkv)
    n_kv = Tkp // tkv

    qp = jnp.pad(q, ((0, 0), (0, Tqp - Tq), (0, 0))) if Tqp != Tq else q
    kp = jnp.pad(k, ((0, 0), (0, Tkp - Tk), (0, 0))) if Tkp != Tk else k
    vp = jnp.pad(v, ((0, 0), (0, Tkp - Tk), (0, 0))) if Tkp != Tk else v

    if causal:
        # Clamp past-diagonal kv tiles to the last needed block index: the block index
        # repeats across those steps, so Pallas elides the HBM->VMEM DMA (not just compute).
        def kv_map(bh, i, j):
            last = jnp.minimum((i * tq + (tq - 1)) // tkv, n_kv - 1)
            return (bh, jnp.minimum(j, last), 0)
    else:
        def kv_map(bh, i, j):
            return (bh, j, 0)

    out = pl.pallas_call(
        functools.partial(_flash_attn_kernel, causal=causal, kv_len=Tk,
                          q_tile=tq, kv_tile=tkv, mask_pad=(Tkp != Tk)),
        out_shape=jax.ShapeDtypeStruct((BH, Tqp, Dh), q.dtype),
        grid_spec=pltpu.PrefetchScalarGridSpec(
            num_scalar_prefetch=0,
            grid=(BH, Tqp // tq, n_kv),
            in_specs=[
                pl.BlockSpec((1, tq, Dh), lambda bh, i, j: (bh, i, 0)),
                pl.BlockSpec((1, tkv, Dh), kv_map),
                pl.BlockSpec((1, tkv, Dh), kv_map),
            ],
            out_specs=pl.BlockSpec((1, tq, Dh), lambda bh, i, j: (bh, i, 0)),
            scratch_shapes=[
                pltpu.VMEM((tq, 128), jnp.float32),   # running max m (lane-broadcast)
                pltpu.VMEM((tq, 128), jnp.float32),   # running sum l (lane-broadcast)
                pltpu.VMEM((tq, Dh), jnp.float32),    # output accumulator
            ],
        ),
        compiler_params=pltpu.CompilerParams(
            dimension_semantics=("parallel", "parallel", "arbitrary")),
    )(qp, kp, vp)
    return out[:, :Tq, :]


# ------------------------------ MultiHeadAttention module ------------------------------

def init_mha_params(key, n_state, n_head):
    ks = jax.random.split(key, 7)
    std = 1.0 / math.sqrt(n_state)

    def dense(k):
        return jax.random.uniform(k, (n_state, n_state), jnp.float32, -std, std)

    wq, wk, wv, wo = dense(ks[0]), dense(ks[1]), dense(ks[2]), dense(ks[3])
    bq = jax.random.uniform(ks[4], (n_state,), jnp.float32, -std, std)
    bv = jax.random.uniform(ks[5], (n_state,), jnp.float32, -std, std)
    bo = jax.random.uniform(ks[6], (n_state,), jnp.float32, -std, std)

    dh = n_state // n_head
    scale = dh ** -0.5                       # SDPA scale, folded into the q projection
    wq_s, bq_s = wq * scale, bq * scale
    zeros = jnp.zeros((n_state,), jnp.float32)   # key projection has no bias

    return dict(
        n_head=n_head, n_state=n_state,
        # raw f32 weights (kept only for the pure-JAX reference)
        wq=wq, bq=bq, wk=wk, wv=wv, bv=bv, wo=wo, bo=bo,
        # packed (fused, scaled, bf16, pre-padded) weights for the kernels — built once
        qkv=pack_linear(jnp.concatenate([wq_s, wk, wv], axis=1),
                        jnp.concatenate([bq_s, zeros, bv], axis=0)),   # (D, 3D)
        q=pack_linear(wq_s, bq_s),                                     # (D, D) cross-attn q
        kv=pack_linear(jnp.concatenate([wk, wv], axis=1),
                       jnp.concatenate([zeros, bv], axis=0)),          # (D, 2D) cross-attn kv
        out=pack_linear(wo, bo),                                       # (D, D)
    )


def multi_head_attention(params, x, xa=None, mask=None, kv_cache=None):
    """Matches MultiHeadAttention.forward (SDPA path): returns (out, qk=None)."""
    # TODO(synk): kv_cache (incremental-decoding key/value reuse keyed by module) is a
    #             runtime-side cache and is not implemented in this forward-only kernel.
    B, T, D = x.shape
    H = params["n_head"]
    Dh = D // H
    x2d = x.reshape(-1, D)

    if xa is None:
        qkv = pallas_linear(x2d, params["qkv"], out_dtype=COMPUTE_DTYPE)     # fused QKV, (B*T, 3D)
        qkv = qkv.reshape(B, T, 3, H, Dh).transpose(2, 0, 3, 1, 4)           # (3, B, H, T, Dh)
        q = qkv[0].reshape(B * H, T, Dh)
        k = qkv[1].reshape(B * H, T, Dh)
        v = qkv[2].reshape(B * H, T, Dh)
    else:
        Ts = xa.shape[1]
        q = pallas_linear(x2d, params["q"], out_dtype=COMPUTE_DTYPE)
        q = q.reshape(B, T, H, Dh).transpose(0, 2, 1, 3).reshape(B * H, T, Dh)
        kv = pallas_linear(xa.reshape(-1, D), params["kv"], out_dtype=COMPUTE_DTYPE)  # fused KV
        kv = kv.reshape(B, Ts, 2, H, Dh).transpose(2, 0, 3, 1, 4)            # (2, B, H, Ts, Dh)
        k = kv[0].reshape(B * H, Ts, Dh)
        v = kv[1].reshape(B * H, Ts, Dh)

    causal = (mask is not None) and (T > 1)   # SDPA: is_causal = mask is not None and n_ctx > 1
    o = pallas_flash_attention(q, k, v, causal)                              # (B*H, T, Dh) bf16
    o = o.reshape(B, H, T, Dh).transpose(0, 2, 1, 3).reshape(-1, D)
    out = pallas_linear(o, params["out"], out_dtype=jnp.float32).reshape(B, T, D)
    return out, None   # qk is None on the SDPA path


# ------------------------------ pure-JAX reference (for checking) ------------------------------

def mha_reference(params, x, xa=None, mask=None):
    B, T, D = x.shape
    H = params["n_head"]
    Dh = D // H
    src = x if xa is None else xa
    q = x @ params["wq"] + params["bq"]
    k = src @ params["wk"]
    v = src @ params["wv"] + params["bv"]

    def heads(t):
        return t.reshape(B, t.shape[1], H, Dh).transpose(0, 2, 1, 3)

    qh, kh, vh = heads(q), heads(k), heads(v)
    s = jnp.einsum("bhqd,bhkd->bhqk", qh, kh) * (Dh ** -0.5)
    if mask is not None and T > 1:
        Tk = kh.shape[2]
        row = jnp.arange(T)[:, None]
        col = jnp.arange(Tk)[None, :]
        s = jnp.where(col <= row, s, -jnp.inf)
    w = jax.nn.softmax(s, axis=-1)
    o = jnp.einsum("bhqk,bhkd->bhqd", w, vh).transpose(0, 2, 1, 3).reshape(B, T, D)
    return o @ params["wo"] + params["bo"]


# ------------------------------ main ------------------------------

if __name__ == "__main__":
    B, T, D, H = 2, 8, 32, 2
    key = jax.random.PRNGKey(0)
    kparam, kx, ka = jax.random.split(key, 3)

    params = init_mha_params(kparam, D, H)
    x = jax.random.normal(kx, (B, T, D), jnp.float32)
    xa = jax.random.normal(ka, (B, 12, D), jnp.float32)
    mask = jnp.full((T, T), -jnp.inf, jnp.float32)   # presence triggers the causal SDPA path

    # causal self-attention
    out_self, qk_self = multi_head_attention(params, x, xa=None, mask=mask)
    out_self = jax.block_until_ready(out_self)
    # cross-attention (no mask)
    out_cross, qk_cross = multi_head_attention(params, x, xa=xa, mask=None)
    out_cross = jax.block_until_ready(out_cross)

    assert out_self.shape == (B, T, D) and out_cross.shape == (B, T, D)
    assert qk_self is None and qk_cross is None

    ref_self = mha_reference(params, x, None, mask)
    ref_cross = mha_reference(params, x, xa, None)

    def _check(a, b):
        a = np.asarray(a, np.float32)
        b = np.asarray(b, np.float32)
        assert np.all(np.isfinite(a))
        rel = np.linalg.norm(a - b) / (np.linalg.norm(b) + 1e-12)
        mad = np.max(np.abs(a - b))
        # bf16 MXU operands -> loosened tolerance vs the f32 reference
        assert rel < 3e-2 and mad < 1e-1, (rel, mad)

    _check(out_self, ref_self)
    _check(out_cross, ref_cross)
    print("KERNEL_OK")
</pallas_src>

<mosaic_0001>
module attributes {stable_mosaic.version = 11 : i64} {
  func.func @_matmul_bias_kernel(%arg0: i32, %arg1: i32, %arg2: i32, %arg3: memref<16x128xbf16, #tpu.memory_space<vmem>>, %arg4: memref<128x128xbf16, #tpu.memory_space<vmem>>, %arg5: memref<1x128xf32, #tpu.memory_space<vmem>>, %arg6: memref<16x128xbf16, #tpu.memory_space<vmem>>, %arg7: memref<16x128xf32, #tpu.memory_space<vmem>>) attributes {dimension_semantics = [#tpu.dimension_semantics<parallel>, #tpu.dimension_semantics<parallel>, #tpu.dimension_semantics<arbitrary>], iteration_bounds = array<i64: 1, 1, 1>, scalar_prefetch = 0 : i64, scratch_operands = 1 : i64, tpu.core_type = #tpu.core_type<tc>, window_params = [{transform_indices = @transform_0, window_bounds = array<i64: 16, 128>}, {transform_indices = @transform_1, window_bounds = array<i64: 128, 128>}, {transform_indices = @transform_2, window_bounds = array<i64: 1, 128>}, {transform_indices = @transform_3, window_bounds = array<i64: 16, 128>}]} {
    %c0_i32 = arith.constant 0 : i32
    %0 = arith.cmpi eq, %arg2, %c0_i32 : i32
    %1 = arith.extui %0 : i1 to i32
    %c0_i32_0 = arith.constant 0 : i32
    %2 = arith.cmpi ne, %1, %c0_i32_0 : i32
    scf.if %2 {
      %cst_10 = arith.constant 0.000000e+00 : f32
      %12 = vector.broadcast %cst_10 : f32 to vector<16x128xf32>
      %c0_11 = arith.constant 0 : index
      %c0_12 = arith.constant 0 : index
      %13 = vector.load %arg7[%c0_11, %c0_12] : memref<16x128xf32, #tpu.memory_space<vmem>>, vector<16x128xf32>
      tpu.vector_store %arg7[%c0_11, %c0_12], %12 {strides = array<i32>} : memref<16x128xf32, #tpu.memory_space<vmem>>, vector<16x128xf32>,
    } else {
    }
    %c0 = arith.constant 0 : index
    %c0_1 = arith.constant 0 : index
    %3 = vector.load %arg7[%c0, %c0_1] : memref<16x128xf32, #tpu.memory_space<vmem>>, vector<16x128xf32>
    %c0_2 = arith.constant 0 : index
    %c0_3 = arith.constant 0 : index
    %4 = vector.load %arg3[%c0_2, %c0_3] : memref<16x128xbf16, #tpu.memory_space<vmem>>, vector<16x128xbf16>
    %c0_4 = arith.constant 0 : index
    %c0_5 = arith.constant 0 : index
    %5 = vector.load %arg4[%c0_4, %c0_5] : memref<128x128xbf16, #tpu.memory_space<vmem>>, vector<128x128xbf16>
    %cst = arith.constant dense<0.000000e+00> : vector<16x128xf32>
    %6 = tpu.matmul %4, %5, %cst {dimension_numbers = #tpu.dot_dimension_numbers<[1], [0], [0], [1], [0, 0, 1, 1], [], []>} : vector<16x128xbf16>, vector<128x128xbf16>, vector<16x128xf32> -> vector<16x128xf32>
    %7 = arith.addf %3, %6 : vector<16x128xf32>
    %c0_6 = arith.constant 0 : index
    %c0_7 = arith.constant 0 : index
    %8 = vector.load %arg7[%c0_6, %c0_7] : memref<16x128xf32, #tpu.memory_space<vmem>>, vector<16x128xf32>
    tpu.vector_store %arg7[%c0_6, %c0_7], %7 {strides = array<i32>} : memref<16x128xf32, #tpu.memory_space<vmem>>, vector<16x128xf32>,
    %c0_i32_8 = arith.constant 0 : i32
    %9 = arith.cmpi eq, %arg2, %c0_i32_8 : i32
    %10 = arith.extui %9 : i1 to i32
    %c0_i32_9 = arith.constant 0 : i32
    %11 = arith.cmpi ne, %10, %c0_i32_9 : i32
    scf.if %11 {
      %c0_10 = arith.constant 0 : index
      %c0_11 = arith.constant 0 : index
      %12 = vector.load %arg7[%c0_10, %c0_11] : memref<16x128xf32, #tpu.memory_space<vmem>>, vector<16x128xf32>
      %c0_12 = arith.constant 0 : index
      %c0_13 = arith.constant 0 : index
      %13 = vector.load %arg5[%c0_12, %c0_13] : memref<1x128xf32, #tpu.memory_space<vmem>>, vector<1x128xf32>
      %14 = vector.broadcast %13 : vector<1x128xf32> to vector<16x128xf32>
      %15 = arith.addf %12, %14 : vector<16x128xf32>
      %16 = arith.truncf %15 : vector<16x128xf32> to vector<16x128xbf16>
      %c0_14 = arith.constant 0 : index
      %c0_15 = arith.constant 0 : index
      %17 = vector.load %arg6[%c0_14, %c0_15] : memref<16x128xbf16, #tpu.memory_space<vmem>>, vector<16x128xbf16>
      tpu.vector_store %arg6[%c0_14, %c0_15], %16 {strides = array<i32>} : memref<16x128xbf16, #tpu.memory_space<vmem>>, vector<16x128xbf16>,
    } else {
    }
    return
  }
  func.func @transform_0(%arg0: i32, %arg1: i32, %arg2: i32) -> (i32, i32) {
    %c0_i32 = arith.constant 0 : i32
    return %arg0, %arg2 : i32, i32
  }
  func.func @transform_1(%arg0: i32, %arg1: i32, %arg2: i32) -> (i32, i32) {
    %c0_i32 = arith.constant 0 : i32
    return %arg2, %arg1 : i32, i32
  }
  func.func @transform_2(%arg0: i32, %arg1: i32, %arg2: i32) -> (i32, i32) {
    %c0_i32 = arith.constant 0 : i32
    %c0_i32_0 = arith.constant 0 : i32
    return %c0_i32, %arg1 : i32, i32
  }
  func.func @transform_3(%arg0: i32, %arg1: i32, %arg2: i32) -> (i32, i32) {
    %c0_i32 = arith.constant 0 : i32
    return %arg0, %arg1 : i32, i32
  }
}

</mosaic_0001>

<llo_original>
// kernel: tpu_custom_call.1
$region0: #{tpu_custom_call.1}
  #allocation0 [shape = 'u32[]', space=smem, size = 0x4, offset = 0x4, fixed_abs, tag = 'smem constant byte address 0x4 - core index']
  #allocation1 [shape = 'u32[72,128]{1,0:T(1,128)}', space=vmem, size = 0x9000, scoped, tag = 'internal scratch']
  #allocation2 [shape = 'f32[16,128]{1,0:T(8,128)}', space=vmem, size = 0x2000, scoped, tag = 'scratch operand']
  %s0 = inlined_call_operand.hbm [shape: bf16[16,128], index: 0, kind: input, shape index: {}]
  %s1 = inlined_call_operand.hbm [shape: bf16[128,128], index: 1, kind: input, shape index: {}]
  %s2 = inlined_call_operand.vmem [shape: f32[1,128], index: 2, kind: input, shape index: {}]
  %s3 = inlined_call_operand.hbm [shape: bf16[16,128], index: 3, kind: output, shape index: {}]
  %s4 = sld [smem:[#allocation0]]
  $region38: #{tpu_custom_call.1} parent=0
    _
  %s6 = ssub.s32 1, %s4
  %s7 = scalar_select 0, %s6, %s4
  $region1: #{tpu_custom_call.1} parent=0
    #allocation3 [shape = 'u8[4096]{0}', space=vmem, size = 0x1000, scoped, tag = 'input window, operand 0, single buffered']
    #allocation4 [shape = 's32[1]{0}', space=sflag, size = 0x4, scoped, tag = 'scoped memory for tpu_custom_call.1']
    #allocation5 [shape = 's32[1]{0}', space=sflag, size = 0x4, scoped, tag = 'scoped memory for tpu_custom_call.1']
    #allocation6 [shape = 'u8[32768]{0}', space=vmem, size = 0x8000, scoped, tag = 'input window, operand 1, single buffered']
    #allocation7 [shape = 's32[1]{0}', space=sflag, size = 0x4, scoped, tag = 'scoped memory for tpu_custom_call.1']
    #allocation8 [shape = 'u8[4096]{0}', space=vmem, size = 0x1000, scoped, tag = 'output window, operand 0, single buffered']
    %8 = vsyncpa [#allocation4], 0
    %9 = vsyncpa [#allocation7], 0
    %10 = vsyncpa [#allocation5], 0
    // Predicated region
    $region2: #{tpu_custom_call.1} parent=1 // pred_check
      _
    $region3: #{tpu_custom_call.1} parent=1 // pred_check_branch
      %12 = sbr.rel (0) target = $region5
    $region4: #{tpu_custom_call.1} parent=1 // pred_region
      %14 = vsyncadd [#allocation4], 0
      %s15 = sshll.u32 %s0, 4
      %s16 = int_to_ptr.hbm [resolvable:$true] %s15
      %s17 = sshll.u32 [#allocation3], 4
      %s18 = int_to_ptr.vmem [resolvable:$true] %s17
      %23 = dma.hbm_to_vmem [thread:$0]  %s16, 128, %s18, [#allocation4], 64, 64, 4
    $region5: #{tpu_custom_call.1} parent=1 // pred_fallthru
      _
    // Predicated region
    $region6: #{tpu_custom_call.1} parent=1 // pred_check
      _
    $region7: #{tpu_custom_call.1} parent=1 // pred_check_branch
      %25 = sbr.rel (0) target = $region9
    $region8: #{tpu_custom_call.1} parent=1 // pred_region
      %27 = vsyncadd [#allocation7], 0
      %s28 = sshll.u32 %s1, 4
      %s29 = int_to_ptr.hbm [resolvable:$true] %s28
      %s30 = sshll.u32 [#allocation6], 4
      %s31 = int_to_ptr.vmem [resolvable:$true] %s30
      %36 = dma.hbm_to_vmem [thread:$0]  %s29, 1024, %s31, [#allocation7], 64, 64, 4
    $region9: #{tpu_custom_call.1} parent=1 // pred_fallthru
      _
    // Predicated region
    $region10: #{tpu_custom_call.1} parent=1 // pred_check
      _
    $region11: #{tpu_custom_call.1} parent=1 // pred_check_branch
      %38 = sbr.rel (0) target = $region13
    $region12: #{tpu_custom_call.1} parent=1 // pred_region
      _
    $region13: #{tpu_custom_call.1} parent=1 // pred_fallthru
      _
    // Predicated region
    $region14: #{tpu_custom_call.1} parent=1 // pred_check
      _
    $region15: #{tpu_custom_call.1} parent=1 // pred_check_branch
      %40 = sbr.rel (0) target = $region17
    $region16: #{tpu_custom_call.1} parent=1 // pred_region
      %42 = dma.done [#allocation4], 128
    $region17: #{tpu_custom_call.1} parent=1 // pred_fallthru
      _
    // Predicated region
    $region18: #{tpu_custom_call.1} parent=1 // pred_check
      _
    $region19: #{tpu_custom_call.1} parent=1 // pred_check_branch
      %44 = sbr.rel (0) target = $region21
    $region20: #{tpu_custom_call.1} parent=1 // pred_region
      %46 = dma.done [#allocation7], 1024
    $region21: #{tpu_custom_call.1} parent=1 // pred_fallthru
      _
    %p47 = scmp.eq.s32.totalorder 0, 0
    // Predicated region
    $region22: #{tpu_custom_call.1} parent=1 // pred_check
      %p48 = pneg %p47
    $region23: #{tpu_custom_call.1} parent=1 // pred_check_branch
      %50 = sbr.rel (%p48) target = $region25
    $region24: #{tpu_custom_call.1} parent=1 // pred_region
      %51 = vst [vmem:[#allocation2] sm:$0xff] 0.0
      %52 = vst [vmem:[#allocation2 + $0x8] sm:$0xff] 0.0
    $region25: #{tpu_custom_call.1} parent=1 // pred_fallthru
      _
    %v53 = vld [vmem:[#allocation2] sm:$0xff]
    %v54 = vld [vmem:[#allocation2 + $0x8] sm:$0xff]
    %v55 = vld [vmem:[#allocation3] sm:$0xf]
    %v56 = vld [vmem:[#allocation3 + $0x4] sm:$0xf]
    %v57 = vld [vmem:[#allocation6] sm:$0xf]
    %v58 = vld [vmem:[#allocation6 + $0x4] sm:$0xf]
    %v59 = vld [vmem:[#allocation6 + $0x8] sm:$0xf]
    %v60 = vld [vmem:[#allocation6 + $0xc] sm:$0xf]
    %v61 = vld [vmem:[#allocation6 + $0x10] sm:$0xf]
    %v62 = vld [vmem:[#allocation6 + $0x14] sm:$0xf]
    %v63 = vld [vmem:[#allocation6 + $0x18] sm:$0xf]
    %v64 = vld [vmem:[#allocation6 + $0x1c] sm:$0xf]
    %v65 = vld [vmem:[#allocation6 + $0x20] sm:$0xf]
    %v66 = vld [vmem:[#allocation6 + $0x24] sm:$0xf]
    %v67 = vld [vmem:[#allocation6 + $0x28] sm:$0xf]
    %v68 = vld [vmem:[#allocation6 + $0x2c] sm:$0xf]
    %v69 = vld [vmem:[#allocation6 + $0x30] sm:$0xf]
    %v70 = vld [vmem:[#allocation6 + $0x34] sm:$0xf]
    %v71 = vld [vmem:[#allocation6 + $0x38] sm:$0xf]
    %v72 = vld [vmem:[#allocation6 + $0x3c] sm:$0xf]
    %v75 = vunpack.c.l.b16 %v55
    %v76 = vunpack.c.l.b16 %v56
    %v77 = vpack.c.b16 %v76, %v75
    %v95 = vunpack.c.l.b16 %v57
    %v96 = vunpack.c.l.b16 %v58
    %v97 = vunpack.c.l.b16 %v59
    %v98 = vunpack.c.l.b16 %v60
    %v99 = vunpack.c.l.b16 %v61
    %v100 = vunpack.c.l.b16 %v62
    %v101 = vunpack.c.l.b16 %v63
    %v102 = vunpack.c.l.b16 %v64
    %v103 = vunpack.c.l.b16 %v65
    %v104 = vunpack.c.l.b16 %v66
    %v105 = vunpack.c.l.b16 %v67
    %v106 = vunpack.c.l.b16 %v68
    %v107 = vunpack.c.l.b16 %v69
    %v108 = vunpack.c.l.b16 %v70
    %v109 = vunpack.c.l.b16 %v71
    %v110 = vunpack.c.l.b16 %v72
    %v111 = vpack.c.b16 %v96, %v95
    %v112 = vpack.c.b16 %v98, %v97
    %v113 = vpack.c.b16 %v100, %v99
    %v114 = vpack.c.b16 %v102, %v101
    %v115 = vpack.c.b16 %v104, %v103
    %v116 = vpack.c.b16 %v106, %v105
    %v117 = vpack.c.b16 %v108, %v107
    %v118 = vpack.c.b16 %v110, %v109
    %127 = vmatpush.bf16.msra.mxu0 %v118
    %128 = vmatpush.bf16.msra.mxu0 %v117
    %129 = vmatpush.bf16.msra.mxu0 %v116
    %130 = vmatpush.bf16.msra.mxu0 %v115
    %131 = vmatpush.bf16.msra.mxu0 %v114
    %132 = vmatpush.bf16.msra.mxu0 %v113
    %133 = vmatpush.bf16.msra.mxu0 %v112
    %134 = vmatpush.bf16.msra.mxu0 %v111
    %135 = vmatmul.bf16.gmra.mxu0 %v77
    %v136 = vpop.f32.mrf.mxu0
    %v137 = vadd.f32 0.0, %v136
    %v138 = vpop.f32.mrf.mxu0
    %v139 = vadd.f32 0.0, %v138
    %140 = vdwg.mxu0
    %v141 = vadd.f32 %v53, %v137
    %v142 = vadd.f32 %v54, %v139
    %143 = vst [vmem:[#allocation2] sm:$0xff] %v141
    %144 = vst [vmem:[#allocation2 + $0x8] sm:$0xff] %v142
    // Predicated region
    $region26: #{tpu_custom_call.1} parent=1 // pred_check
      %p145 = pneg %p47
    $region27: #{tpu_custom_call.1} parent=1 // pred_check_branch
      %147 = sbr.rel (%p145) target = $region29
    $region28: #{tpu_custom_call.1} parent=1 // pred_region
      %v148 = vld [vmem:[#allocation2] sm:$0xff]
      %v149 = vld [vmem:[#allocation2 + $0x8] sm:$0xff]
      %v150 = vld [vmem:[%s2] sm:$0x1]
      %v152 = vperm.slane %v150, 0
      %v154 = vadd.f32 %v148, %v152
      %v155 = vadd.f32 %v149, %v152
      %v156 = vpack.c.bf16 %v154, %v154
      %v157 = vpack.c.bf16 %v155, %v155
      %158 = vst [vmem:[#allocation8] sm:$0xf] %v156
      %159 = vst [vmem:[#allocation8 + $0x4] sm:$0xf] %v157
    $region29: #{tpu_custom_call.1} parent=1 // pred_fallthru
      _
    // Predicated region
    $region30: #{tpu_custom_call.1} parent=1 // pred_check
      _
    $region31: #{tpu_custom_call.1} parent=1 // pred_check_branch
      %161 = sbr.rel (0) target = $region33
    $region32: #{tpu_custom_call.1} parent=1 // pred_region
      %163 = vsyncadd [#allocation5], 0
      %s164 = sshll.u32 [#allocation8], 4
      %s165 = int_to_ptr.vmem [resolvable:$true] %s164
      %s166 = sshll.u32 %s3, 4
      %s167 = int_to_ptr.hbm [resolvable:$true] %s166
      %172 = dma.vmem_to_hbm [thread:$0]  %s165, 128, %s167, [#allocation5], 64, 64, 4
    $region33: #{tpu_custom_call.1} parent=1 // pred_fallthru
      _
    // Predicated region
    $region34: #{tpu_custom_call.1} parent=1 // pred_check
      _
    $region35: #{tpu_custom_call.1} parent=1 // pred_check_branch
      %174 = sbr.rel (0) target = $region37
    $region36: #{tpu_custom_call.1} parent=1 // pred_region
      %176 = dma.done [#allocation5], 128
    $region37: #{tpu_custom_call.1} parent=1 // pred_fallthru
      _
    %177 = vsyncpa [#allocation4], 1
    %178 = vsyncpa [#allocation7], 1
    %179 = vsyncpa [#allocation5], 1

</llo_original>
